<compile_context>
chip_gen: v5e
topology: v5e:2x2
jax: 0.10.0
libtpu: 0.0.40
codegen_flags: <defaults>
</compile_context>

<pallas_src>
import functools

import jax
import jax.numpy as jnp
import numpy as np
from jax.experimental import pallas as pl
from jax.experimental.pallas import tpu as pltpu


# With unit-norm rows the logits lie in [-scale, scale], so exp(logits - scale)
# has exponents in [-2*scale, 0]; keep 2*scale well inside the f32 exp range.
_MAX_SAFE_LOGIT_SCALE = 43.0


def _dtype_row_granule(dtype):
    itemsize = jnp.dtype(dtype).itemsize
    if itemsize == 1:
        return 32
    if itemsize == 2:
        return 16
    return 8


def _vmem_cap_bytes():
    """Per-generation scoped-VMEM budget with headroom for Mosaic scratch."""
    mib = 1024 * 1024
    try:
        phys = int(pltpu.get_tpu_info().vmem_capacity_bytes)
    except Exception:  # conservative fallback if the query is unavailable
        phys = 64 * mib
    if phys <= 64 * mib:                     # v7x-class: 64 MiB per TensorCore
        return 52 * mib
    return min(phys - 24 * mib, 104 * mib)   # v5e / v6e: 128 MiB physical


def _make_kernel(B, D, in_dtype, cdtype):
    direct_dma = jnp.dtype(in_dtype) == jnp.dtype(cdtype)

    def kernel(scale_ref, v_ref, t_hbm_ref, loss_ref, tn_ref, colsum_ref, acc_ref):
        i = pl.program_id(0)
        scale = scale_ref[0, 0]

        @pl.when(i == 0)
        def _init():
            def _normalize_into_cache(raw_ref, sem):
                cp = pltpu.make_async_copy(t_hbm_ref, raw_ref, sem)
                cp.start()
                cp.wait()
                t = raw_ref[...].astype(jnp.float32)
                t = t * jax.lax.rsqrt(jnp.sum(t * t, axis=-1, keepdims=True) + 1e-12)
                tn_ref[...] = t.astype(tn_ref.dtype)

            if direct_dma:
                # Cache dtype == input dtype: DMA straight into the cache and
                # normalize it in place (no staging buffer).
                pl.run_scoped(functools.partial(_normalize_into_cache, tn_ref),
                              pltpu.SemaphoreType.DMA)
            else:
                # Raw staging buffer only lives inside this init scope.
                pl.run_scoped(_normalize_into_cache,
                              pltpu.VMEM((B, D), in_dtype),
                              pltpu.SemaphoreType.DMA)

            colsum_ref[...] = jnp.zeros_like(colsum_ref)
            acc_ref[...] = jnp.zeros_like(acc_ref)

        tm = v_ref.shape[0]

        # Row-wise L2 normalization of this video tile with the logit scale
        # folded in (O(TM*D) instead of scaling the [TM, B] logits).
        v = v_ref[...].astype(jnp.float32)
        v = v * (scale * jax.lax.rsqrt(jnp.sum(v * v, axis=-1, keepdims=True) + 1e-12))
        v_cd = v.astype(cdtype)

        # [TM, B] scaled cosine-similarity logits on the MXU; contraction over
        # the feature dim of both operands (flash-attention's q @ k^T form,
        # no per-step transpose of the text cache).
        logits = jax.lax.dot_general(
            v_cd, tn_ref[...],
            dimension_numbers=(((1,), (1,)), ((), ())),
            preferred_element_type=jnp.float32)

        # Diagonal logits for this tile from the f32 scale-folded video rows.
        row0 = pl.multiple_of(i * tm, tm)
        t_tile = tn_ref[pl.ds(row0, tm), :].astype(jnp.float32)
        diag = jnp.sum(v * t_tile, axis=-1, keepdims=True)             # [TM, 1]

        # Stable shifted softmax: rows are unit-norm => logits <= scale.
        p = jnp.exp(logits - scale)                                    # [TM, B]
        row_lse = jnp.log(jnp.sum(p, axis=-1, keepdims=True)) + scale  # [TM, 1]

        # Fused scalar accumulator + online column sum-exp.
        acc_ref[...] += (jnp.sum(row_lse, axis=0, keepdims=True)
                         - 2.0 * jnp.sum(diag, axis=0, keepdims=True))  # (1, 1)
        colsum_ref[...] += jnp.sum(p, axis=0, keepdims=True)            # (1, B)

        @pl.when(i == pl.num_programs(0) - 1)
        def _finalize():
            col_lse_sum = (jnp.sum(jnp.log(colsum_ref[...]), axis=-1, keepdims=True)
                           + B * scale)                                  # (1, 1)
            # loss = (sum row_lse + sum col_lse - 2*sum diag) / (2*B)
            loss_ref[...] = 0.5 * (acc_ref[...] + col_lse_sum) / B

    return kernel


def long_short_alignment_loss(video_features, text_features, logit_scale, *,
                              block_rows=None, mxu_bf16=False):
    assert video_features.shape == text_features.shape
    assert video_features.dtype == text_features.dtype
    B, D = video_features.shape
    in_dtype = video_features.dtype

    # MXU compute dtype: bf16 features -> bf16 operands (f32 accumulation);
    # f32 features stay f32 unless mxu_bf16 requests the fast MXU path.
    if jnp.dtype(in_dtype) == jnp.dtype(jnp.bfloat16) or mxu_bf16:
        cdtype = jnp.bfloat16
    else:
        cdtype = jnp.float32

    in_bytes = jnp.dtype(in_dtype).itemsize
    cd_bytes = jnp.dtype(cdtype).itemsize
    granule = _dtype_row_granule(in_dtype)
    cap = _vmem_cap_bytes()

    # Raw text staging only exists (inside the init scope) when the cache
    # dtype differs from the input dtype.
    raw_peak = 0 if jnp.dtype(in_dtype) == jnp.dtype(cdtype) else B * D * in_bytes

    def footprint(tm):
        return (2 * tm * D * in_bytes        # double-buffered video tiles
                + B * D * cd_bytes           # normalized text cache (resident)
                + raw_peak                   # init-time staging (scoped)
                + 4 * tm * B * 4             # logits / exp / reduce working set
                + B * 4 + (1 << 15))         # colsum + slack

    if block_rows is None:
        target = 1024 if cap > 64 * 1024 * 1024 else 512
        candidates = sorted(
            (d for d in range(1, B + 1)
             if B % d == 0 and (d % granule == 0 or d == B)),
            reverse=True)
        block_rows = next((d for d in candidates
                           if d <= target and footprint(d) <= cap),
                          candidates[-1])
    assert B % block_rows == 0, "batch must be divisible by block_rows"
    assert block_rows == B or block_rows % granule == 0, (
        f"block_rows must be a multiple of {granule} for "
        f"{jnp.dtype(in_dtype).name} inputs")
    # TODO(synk): if even the smallest block_rows overflows the cap (huge B on
    # v7x), a column-tiled flash-style variant with online row LSE is needed.

    # Clamp the logit scale so exp(logits - scale) cannot fully underflow.
    # TODO(synk): beyond this scale a per-row / online per-column max pass
    # would be required for exact results.
    scale = jnp.minimum(jnp.asarray(logit_scale, jnp.float32),
                        _MAX_SAFE_LOGIT_SCALE).reshape(1, 1)

    grid = (B // block_rows,)
    vmem_limit = int(min(cap, max(2 * footprint(block_rows), 32 * 1024 * 1024)))

    kernel = _make_kernel(B, D, in_dtype, cdtype)

    out = pl.pallas_call(
        kernel,
        grid=grid,
        out_shape=jax.ShapeDtypeStruct((1, 1), jnp.float32),
        in_specs=[
            pl.BlockSpec(memory_space=pltpu.MemorySpace.SMEM),      # logit scale
            pl.BlockSpec((block_rows, D), lambda i: (i, 0)),        # video tiles
            pl.BlockSpec(memory_space=pl.ANY),                      # text (HBM)
        ],
        out_specs=pl.BlockSpec((1, 1), lambda i: (0, 0)),           # scalar loss
        scratch_shapes=[
            pltpu.VMEM((B, D), cdtype),          # normalized text cache
            pltpu.VMEM((1, B), jnp.float32),     # online column sum-exp
            pltpu.VMEM((1, 1), jnp.float32),     # sum(row_lse) - 2*sum(diag)
        ],
        compiler_params=pltpu.CompilerParams(
            dimension_semantics=("arbitrary",),   # cross-step column reduction
            vmem_limit_bytes=vmem_limit),
    )(scale, video_features, text_features)
    return out[0, 0]


def _reference_loss(v, t, scale):
    v = v.astype(jnp.float32)
    t = t.astype(jnp.float32)
    v = v / jnp.linalg.norm(v, axis=-1, keepdims=True)
    t = t / jnp.linalg.norm(t, axis=-1, keepdims=True)
    logits = scale * (v @ t.T)
    labels = jnp.arange(logits.shape[0])
    lv = -jnp.mean(jax.nn.log_softmax(logits, axis=-1)[labels, labels])
    lt = -jnp.mean(jax.nn.log_softmax(logits.T, axis=-1)[labels, labels])
    return 0.5 * (lv + lt)


if __name__ == "__main__":
    key = jax.random.PRNGKey(0)
    kv, kt = jax.random.split(key)
    # Small but TPU-friendly shapes: feature dim a multiple of 128 (lanes).
    B, D = 32, 128
    video_features = jax.random.normal(kv, (B, D), dtype=jnp.float32)
    text_features = jax.random.normal(kt, (B, D), dtype=jnp.float32)
    logit_scale = jnp.float32(1.0 / 0.07)   # CLIP-style init

    ref = _reference_loss(video_features, text_features, logit_scale)

    # (1) f32 path with a small explicit tile to exercise the multi-step
    #     online column accumulation (production sizes auto-pick larger tiles).
    loss = long_short_alignment_loss(video_features, text_features, logit_scale,
                                     block_rows=8)
    loss = jax.block_until_ready(loss)
    np.testing.assert_allclose(np.asarray(loss), np.asarray(ref),
                               rtol=1e-4, atol=1e-4)

    # (2) f32 path with auto-picked block_rows (single resident step).
    loss_auto = long_short_alignment_loss(video_features, text_features,
                                          logit_scale)
    loss_auto = jax.block_until_ready(loss_auto)
    np.testing.assert_allclose(np.asarray(loss_auto), np.asarray(ref),
                               rtol=1e-4, atol=1e-4)

    # (3) bf16 feature path: direct DMA into the bf16 cache, 16-row granule.
    loss_bf16 = long_short_alignment_loss(video_features.astype(jnp.bfloat16),
                                          text_features.astype(jnp.bfloat16),
                                          logit_scale, block_rows=16)
    loss_bf16 = jax.block_until_ready(loss_bf16)
    assert np.isfinite(np.asarray(loss_bf16))
    np.testing.assert_allclose(np.asarray(loss_bf16), np.asarray(ref),
                               rtol=5e-2, atol=2e-1)

    # (4) f32 features with bf16 MXU operands (exercises the scoped raw-text
    #     staging path where cache dtype != input dtype).
    loss_mxu = long_short_alignment_loss(video_features, text_features,
                                         logit_scale, block_rows=16,
                                         mxu_bf16=True)
    loss_mxu = jax.block_until_ready(loss_mxu)
    assert np.isfinite(np.asarray(loss_mxu))
    np.testing.assert_allclose(np.asarray(loss_mxu), np.asarray(ref),
                               rtol=5e-2, atol=2e-1)

    print("KERNEL_OK")
</pallas_src>

<mosaic_0001>
module attributes {stable_mosaic.version = 11 : i64} {
  func.func @kernel(%arg0: i32, %arg1: memref<1x1xf32, #tpu.memory_space<smem>>, %arg2: memref<8x128xf32, #tpu.memory_space<vmem>>, %arg3: memref<32x128xf32, #tpu.memory_space<any>>, %arg4: memref<1x1xf32, #tpu.memory_space<vmem>>, %arg5: memref<32x128xf32, #tpu.memory_space<vmem>>, %arg6: memref<1x32xf32, #tpu.memory_space<vmem>>, %arg7: memref<1x1xf32, #tpu.memory_space<vmem>>) attributes {dimension_semantics = [#tpu.dimension_semantics<arbitrary>], iteration_bounds = array<i64: 4>, scalar_prefetch = 0 : i64, scratch_operands = 3 : i64, tpu.core_type = #tpu.core_type<tc>, window_params = [{transform_indices = @transform_0, window_bounds = array<i64: 1, 1>}, {transform_indices = @transform_1, window_bounds = array<i64: 8, 128>}, {}, {pipeline_mode = #tpu.pipeline_mode<synchronous>, transform_indices = @transform_3, window_bounds = array<i64: 1, 1>}]} {
    %c0 = arith.constant 0 : index
    %c0_0 = arith.constant 0 : index
    %0 = memref.load %arg1[%c0, %c0_0] : memref<1x1xf32, #tpu.memory_space<smem>>
    %c0_i32 = arith.constant 0 : i32
    %1 = arith.cmpi eq, %arg0, %c0_i32 : i32
    %2 = arith.extui %1 : i1 to i32
    %c0_i32_1 = arith.constant 0 : i32
    %3 = arith.cmpi ne, %2, %c0_i32_1 : i32
    scf.if %3 {
      "tpu.region"() ({
        %54 = tpu.sem_alloc : memref<!tpu.dma_semaphore, #tpu.memory_space<semaphore_mem>>
        tpu.enqueue_dma source(%arg3 : memref<32x128xf32, #tpu.memory_space<any>>) target(%arg5 : memref<32x128xf32, #tpu.memory_space<vmem>>) target_semaphore(%54 : memref<!tpu.dma_semaphore, #tpu.memory_space<semaphore_mem>>)
        tpu.wait_dma2 semaphore(%54 : memref<!tpu.dma_semaphore, #tpu.memory_space<semaphore_mem>>) src(%arg3 : memref<32x128xf32, #tpu.memory_space<any>>) dst(%arg5 : memref<32x128xf32, #tpu.memory_space<vmem>>)
        %c0_30 = arith.constant 0 : index
        %c0_31 = arith.constant 0 : index
        %55 = vector.load %arg5[%c0_30, %c0_31] : memref<32x128xf32, #tpu.memory_space<vmem>>, vector<32x128xf32>
        %56 = arith.mulf %55, %55 : vector<32x128xf32>
        %cst_32 = arith.constant dense<0.000000e+00> : vector<32xf32>
        %57 = vector.multi_reduction <add>, %56, %cst_32 [1] : vector<32x128xf32> to vector<32xf32>
        %58 = vector.shape_cast %57 : vector<32xf32> to vector<32x1xf32>
        %cst_33 = arith.constant 9.99999996E-13 : f32
        %59 = vector.broadcast %cst_33 : f32 to vector<32x1xf32>
        %60 = arith.addf %58, %59 : vector<32x1xf32>
        %61 = math.rsqrt %60 : vector<32x1xf32>
        %62 = vector.broadcast %61 : vector<32x1xf32> to vector<32x128xf32>
        %63 = arith.mulf %55, %62 : vector<32x128xf32>
        %c0_34 = arith.constant 0 : index
        %c0_35 = arith.constant 0 : index
        %64 = vector.load %arg5[%c0_34, %c0_35] : memref<32x128xf32, #tpu.memory_space<vmem>>, vector<32x128xf32>
        tpu.vector_store %arg5[%c0_34, %c0_35], %63 {strides = array<i32>} : memref<32x128xf32, #tpu.memory_space<vmem>>, vector<32x128xf32>,
        tpu.yield
      }) : () -> ()
      %cst_24 = arith.constant 0.000000e+00 : f32
      %50 = vector.broadcast %cst_24 : f32 to vector<1x32xf32>
      %c0_25 = arith.constant 0 : index
      %c0_26 = arith.constant 0 : index
      %51 = vector.load %arg6[%c0_25, %c0_26] : memref<1x32xf32, #tpu.memory_space<vmem>>, vector<1x32xf32>
      tpu.vector_store %arg6[%c0_25, %c0_26], %50 {strides = array<i32>} : memref<1x32xf32, #tpu.memory_space<vmem>>, vector<1x32xf32>,
      %cst_27 = arith.constant 0.000000e+00 : f32
      %52 = vector.broadcast %cst_27 : f32 to vector<1x1xf32>
      %c0_28 = arith.constant 0 : index
      %c0_29 = arith.constant 0 : index
      %53 = vector.load %arg7[%c0_28, %c0_29] : memref<1x1xf32, #tpu.memory_space<vmem>>, vector<1x1xf32>
      tpu.vector_store %arg7[%c0_28, %c0_29], %52 {strides = array<i32>} : memref<1x1xf32, #tpu.memory_space<vmem>>, vector<1x1xf32>,
    } else {
    }
    %c0_2 = arith.constant 0 : index
    %c0_3 = arith.constant 0 : index
    %4 = vector.load %arg2[%c0_2, %c0_3] : memref<8x128xf32, #tpu.memory_space<vmem>>, vector<8x128xf32>
    %5 = arith.mulf %4, %4 : vector<8x128xf32>
    %cst = arith.constant dense<0.000000e+00> : vector<8xf32>
    %6 = vector.multi_reduction <add>, %5, %cst [1] : vector<8x128xf32> to vector<8xf32>
    %7 = vector.shape_cast %6 : vector<8xf32> to vector<8x1xf32>
    %cst_4 = arith.constant 9.99999996E-13 : f32
    %8 = vector.broadcast %cst_4 : f32 to vector<8x1xf32>
    %9 = arith.addf %7, %8 : vector<8x1xf32>
    %10 = math.rsqrt %9 : vector<8x1xf32>
    %11 = vector.broadcast %0 : f32 to vector<8x1xf32>
    %12 = arith.mulf %11, %10 : vector<8x1xf32>
    %13 = vector.broadcast %12 : vector<8x1xf32> to vector<8x128xf32>
    %14 = arith.mulf %4, %13 : vector<8x128xf32>
    %c0_5 = arith.constant 0 : index
    %c0_6 = arith.constant 0 : index
    %15 = vector.load %arg5[%c0_5, %c0_6] : memref<32x128xf32, #tpu.memory_space<vmem>>, vector<32x128xf32>
    %cst_7 = arith.constant dense<0.000000e+00> : vector<8x32xf32>
    %16 = tpu.matmul %14, %15, %cst_7 {dimension_numbers = #tpu.dot_dimension_numbers<[1], [1], [0], [0], [0, 0, 1, 0], [], []>} : vector<8x128xf32>, vector<32x128xf32>, vector<8x32xf32> -> vector<8x32xf32>
    %c8_i32 = arith.constant 8 : i32
    %17 = arith.muli %arg0, %c8_i32 : i32
    %18 = tpu.assume_multiple %17, 8 : i32
    %19 = arith.index_cast %18 : i32 to index
    %c0_8 = arith.constant 0 : index
    %20 = vector.load %arg5[%19, %c0_8] : memref<32x128xf32, #tpu.memory_space<vmem>>, vector<8x128xf32>
    %21 = arith.mulf %14, %20 : vector<8x128xf32>
    %cst_9 = arith.constant dense<0.000000e+00> : vector<8xf32>
    %22 = vector.multi_reduction <add>, %21, %cst_9 [1] : vector<8x128xf32> to vector<8xf32>
    %23 = vector.shape_cast %22 : vector<8xf32> to vector<8x1xf32>
    %24 = vector.broadcast %0 : f32 to vector<8x32xf32>
    %25 = arith.subf %16, %24 : vector<8x32xf32>
    %26 = math.exp %25 : vector<8x32xf32>
    %cst_10 = arith.constant dense<0.000000e+00> : vector<8xf32>
    %27 = vector.multi_reduction <add>, %26, %cst_10 [1] : vector<8x32xf32> to vector<8xf32>
    %28 = vector.shape_cast %27 : vector<8xf32> to vector<8x1xf32>
    %29 = math.log %28 : vector<8x1xf32>
    %30 = vector.broadcast %0 : f32 to vector<8x1xf32>
    %31 = arith.addf %29, %30 : vector<8x1xf32>
    %c0_11 = arith.constant 0 : index
    %c0_12 = arith.constant 0 : index
    %32 = vector.load %arg7[%c0_11, %c0_12] : memref<1x1xf32, #tpu.memory_space<vmem>>, vector<1x1xf32>
    %cst_13 = arith.constant dense<0.000000e+00> : vector<1xf32>
    %33 = vector.multi_reduction <add>, %31, %cst_13 [0] : vector<8x1xf32> to vector<1xf32>
    %34 = vector.shape_cast %33 : vector<1xf32> to vector<1x1xf32>
    %cst_14 = arith.constant dense<0.000000e+00> : vector<1xf32>
    %35 = vector.multi_reduction <add>, %23, %cst_14 [0] : vector<8x1xf32> to vector<1xf32>
    %36 = vector.shape_cast %35 : vector<1xf32> to vector<1x1xf32>
    %cst_15 = arith.constant 2.000000e+00 : f32
    %37 = vector.broadcast %cst_15 : f32 to vector<1x1xf32>
    %38 = arith.mulf %37, %36 : vector<1x1xf32>
    %39 = arith.subf %34, %38 : vector<1x1xf32>
    %40 = arith.addf %32, %39 : vector<1x1xf32>
    %c0_16 = arith.constant 0 : index
    %c0_17 = arith.constant 0 : index
    %41 = vector.load %arg7[%c0_16, %c0_17] : memref<1x1xf32, #tpu.memory_space<vmem>>, vector<1x1xf32>
    tpu.vector_store %arg7[%c0_16, %c0_17], %40 {strides = array<i32>} : memref<1x1xf32, #tpu.memory_space<vmem>>, vector<1x1xf32>,
    %c0_18 = arith.constant 0 : index
    %c0_19 = arith.constant 0 : index
    %42 = vector.load %arg6[%c0_18, %c0_19] : memref<1x32xf32, #tpu.memory_space<vmem>>, vector<1x32xf32>
    %cst_20 = arith.constant dense<0.000000e+00> : vector<32xf32>
    %43 = vector.multi_reduction <add>, %26, %cst_20 [0] : vector<8x32xf32> to vector<32xf32>
    %44 = vector.shape_cast %43 : vector<32xf32> to vector<1x32xf32>
    %45 = arith.addf %42, %44 : vector<1x32xf32>
    %c0_21 = arith.constant 0 : index
    %c0_22 = arith.constant 0 : index
    %46 = vector.load %arg6[%c0_21, %c0_22] : memref<1x32xf32, #tpu.memory_space<vmem>>, vector<1x32xf32>
    tpu.vector_store %arg6[%c0_21, %c0_22], %45 {strides = array<i32>} : memref<1x32xf32, #tpu.memory_space<vmem>>, vector<1x32xf32>,
    %c3_i32 = arith.constant 3 : i32
    %47 = arith.cmpi eq, %arg0, %c3_i32 : i32
    %48 = arith.extui %47 : i1 to i32
    %c0_i32_23 = arith.constant 0 : i32
    %49 = arith.cmpi ne, %48, %c0_i32_23 : i32
    scf.if %49 {
      %c0_24 = arith.constant 0 : index
      %c0_25 = arith.constant 0 : index
      %50 = vector.load %arg6[%c0_24, %c0_25] : memref<1x32xf32, #tpu.memory_space<vmem>>, vector<1x32xf32>
      %51 = math.log %50 : vector<1x32xf32>
      %cst_26 = arith.constant dense<0.000000e+00> : vector<1xf32>
      %52 = vector.multi_reduction <add>, %51, %cst_26 [1] : vector<1x32xf32> to vector<1xf32>
      %53 = vector.shape_cast %52 : vector<1xf32> to vector<1x1xf32>
      %cst_27 = arith.constant 3.200000e+01 : f32
      %54 = arith.mulf %cst_27, %0 : f32
      %55 = vector.broadcast %54 : f32 to vector<1x1xf32>
      %56 = arith.addf %53, %55 : vector<1x1xf32>
      %c0_28 = arith.constant 0 : index
      %c0_29 = arith.constant 0 : index
      %57 = vector.load %arg7[%c0_28, %c0_29] : memref<1x1xf32, #tpu.memory_space<vmem>>, vector<1x1xf32>
      %58 = arith.addf %57, %56 : vector<1x1xf32>
      %cst_30 = arith.constant 5.000000e-01 : f32
      %59 = vector.broadcast %cst_30 : f32 to vector<1x1xf32>
      %60 = arith.mulf %59, %58 : vector<1x1xf32>
      %cst_31 = arith.constant 3.200000e+01 : f32
      %61 = vector.broadcast %cst_31 : f32 to vector<1x1xf32>
      %62 = arith.divf %60, %61 : vector<1x1xf32>
      %c0_32 = arith.constant 0 : index
      %c0_33 = arith.constant 0 : index
      %63 = vector.load %arg4[%c0_32, %c0_33] : memref<1x1xf32, #tpu.memory_space<vmem>>, vector<1x1xf32>
      tpu.vector_store %arg4[%c0_32, %c0_33], %62 {strides = array<i32>} : memref<1x1xf32, #tpu.memory_space<vmem>>, vector<1x1xf32>,
    } else {
    }
    return
  }
  func.func @transform_0(%arg0: i32) -> (i32, i32) {
    %c0_i32 = arith.constant 0 : i32
    %c0_i32_0 = arith.constant 0 : i32
    %c0_i32_1 = arith.constant 0 : i32
    return %c0_i32, %c0_i32_0 : i32, i32
  }
  func.func @transform_1(%arg0: i32) -> (i32, i32) {
    %c0_i32 = arith.constant 0 : i32
    %c0_i32_0 = arith.constant 0 : i32
    return %arg0, %c0_i32 : i32, i32
  }
  func.func @transform_3(%arg0: i32) -> (i32, i32) {
    %c0_i32 = arith.constant 0 : i32
    %c0_i32_0 = arith.constant 0 : i32
    %c0_i32_1 = arith.constant 0 : i32
    return %c0_i32, %c0_i32_0 : i32, i32
  }
}

</mosaic_0001>

<llo_original>
// kernel: tpu_custom_call.1
$region0: #{tpu_custom_call.1}
  #allocation0 [shape = 'u32[]', space=smem, size = 0x4, offset = 0x4, fixed_abs, tag = 'smem constant byte address 0x4 - core index']
  #allocation1 [shape = 'u32[72,128]{1,0:T(1,128)}', space=vmem, size = 0x9000, scoped, tag = 'internal scratch']
  #allocation2 [shape = 'f32[32,128]{1,0:T(8,128)}', space=vmem, size = 0x4000, scoped, tag = 'scratch operand']
  #allocation3 [shape = 'f32[1,32]{1,0:T(1,128)}', space=vmem, size = 0x200, scoped, tag = 'scratch operand']
  #allocation4 [shape = 'f32[1,1]{1,0:T(1,128)}', space=vmem, size = 0x200, scoped, tag = 'scratch operand']
  #allocation5 [shape = 'f32[1,1]{1,0:T(1,128)S(6)}', space=smem, size = 0x200, scoped, tag = 'scoped memory for tpu_custom_call.1']
  #allocation11 [shape = 's32[]', space=sflag, size = 0x4, offset = 0, fixed_abs, tag = 'sflag constant byte address 0x0 - dummy sync flag']
  #allocation12 [shape = 's32[]', space=sflag, size = 0x4, offset = 0, fixed_abs, tag = 'sflag constant byte address 0x0 - dummy sync flag']
  #allocation13 [shape = 'u32[]', space=smem, size = 0x4, offset = 0x44, fixed_abs, tag = 'smem constant byte address 0x44 - assertion arg 0']
  #allocation14 [shape = 'u32[]', space=smem, size = 0x4, offset = 0x48, fixed_abs, tag = 'smem constant byte address 0x48 - assertion arg 1']
  %s0 = inlined_call_operand.<no memory space> [shape: f32[1,1], index: 0, kind: input, shape index: {}]
  %s1 = inlined_call_operand.hbm [shape: f32[32,128], index: 1, kind: input, shape index: {}]
  %s2 = inlined_call_operand.hbm [shape: f32[32,128], index: 2, kind: input, shape index: {}]
  %s3 = inlined_call_operand.hbm [shape: f32[1,1], index: 3, kind: output, shape index: {}]
  %s4 = sld [smem:[#allocation0]]
  $region58: #{tpu_custom_call.1} parent=0
    _
  %s6 = ssub.s32 1, %s4
  %s7 = scalar_select 0, %s6, %s4
  %8 = sst [smem:[#allocation5]] %s0
  $region1: #{tpu_custom_call.1} parent=0
    #allocation6 [shape = 'u8[8192]{0}', space=vmem, size = 0x2000, scoped, tag = 'input window, operand 1']
    #allocation7 [shape = 's32[2]{0}', space=sflag, size = 0x8, scoped, tag = 'scoped memory for tpu_custom_call.1']
    #allocation8 [shape = 's32[2]{0}', space=sflag, size = 0x8, scoped, tag = 'scoped memory for tpu_custom_call.1']
    #allocation9 [shape = 'u8[512]{0}', space=vmem, size = 0x400, scoped, tag = 'output window, operand 0, single buffered']
    %9 = vsyncpa [#allocation7], 0
    %s10 = scalar_lea.sflag [#allocation7], 1
    %11 = vsyncpa %s10, 0
    %12 = vsyncpa [#allocation8], 0
    loop: start=0, step=1, limit=6
    $region2: #{tpu_custom_call.1} parent=1 // loop_pre_header
      _
    $region3: #{tpu_custom_call.1} parent=1 // loop_header
      %s14 = sphi 0, %s18
      %p15 = scmp.ge.s32.totalorder %s14, 6
      %s22 = sphi 0, %s22
      %s24 = sphi 0, %s22
      %s25 = sphi 0, %s24
      %s39 = sphi 0, %s25
      %s45 = sphi 0, %s47
      %s48 = sphi 0, %s45
      %s49 = sphi 0, %s48
      %s65 = sphi 0, %s49
      %s69 = sphi 0, %s69
      %s71 = sphi 0, %s69
      %s72 = sphi 0, %s71
      %s86 = sphi 0, %s72
    $region4: #{tpu_custom_call.1} parent=1 // loop_header_branch
      %17 = sbr.rel (%p15) target = $region8
    $region5: #{tpu_custom_call.1} parent=1 // loop_body
      %s19 = ssub.s32 %s14, 1
      %s20 = ssub.s32 %s14, 2
      %s21 = sadd.s32 %s14, 1
      %s23 = sadd.s32 %s22, 1
      %p26 = scmp.eq.s32.totalorder %s14, 3
      %p27 = scmp.ne.s32.totalorder %s22, %s24
      %p28 = scmp.eq.s32.totalorder %s14, 0
      %p29 = por %p27, %p28
      %p30 = scmp.ne.s32.totalorder %s22, %s24
      %p31 = scmp.eq.s32.totalorder %s19, 3
      %p32 = por %p30, %p31
      %p33 = scmp.ne.s32.totalorder %s24, %s25
      %p34 = scmp.eq.s32.totalorder %s19, 0
      %p35 = por %p33, %p34
      %p36 = scmp.ne.s32.totalorder %s24, %s25
      %p37 = scmp.eq.s32.totalorder %s20, 3
      %p38 = por %p36, %p37
      %p40 = scmp.ne.s32.totalorder %s25, %s39
      %p41 = scmp.eq.s32.totalorder %s20, 0
      %p42 = por %p40, %p41
      %s43 = ssub.s32 %s14, %s21
      %p44 = scmp.eq.s32.totalorder %s43, 0
      %s46 = sadd.s32 %s45, 1
      %s47 = scalar_select %p44, %s45, %s46
      %p50 = pneg %p44
      %p51 = scmp.eq.s32.totalorder %s14, 3
      %p52 = por %p50, %p51
      %p53 = scmp.ne.s32.totalorder %s45, %s48
      %p54 = scmp.eq.s32.totalorder %s14, 0
      %p55 = por %p53, %p54
      %p56 = scmp.ne.s32.totalorder %s45, %s48
      %p57 = scmp.eq.s32.totalorder %s19, 3
      %p58 = por %p56, %p57
      %p59 = scmp.ne.s32.totalorder %s48, %s49
      %p60 = scmp.eq.s32.totalorder %s19, 0
      %p61 = por %p59, %p60
      %p62 = scmp.ne.s32.totalorder %s48, %s49
      %p63 = scmp.eq.s32.totalorder %s20, 3
      %p64 = por %p62, %p63
      %p66 = scmp.ne.s32.totalorder %s49, %s65
      %p67 = scmp.eq.s32.totalorder %s20, 0
      %p68 = por %p66, %p67
      %s70 = sadd.s32 %s69, 1
      %p73 = scmp.eq.s32.totalorder %s14, 3
      %p74 = scmp.ne.s32.totalorder %s69, %s71
      %p75 = scmp.eq.s32.totalorder %s14, 0
      %p76 = por %p74, %p75
      %p77 = scmp.ne.s32.totalorder %s69, %s71
      %p78 = scmp.eq.s32.totalorder %s19, 3
      %p79 = por %p77, %p78
      %p80 = scmp.ne.s32.totalorder %s71, %s72
      %p81 = scmp.eq.s32.totalorder %s19, 0
      %p82 = por %p80, %p81
      %p83 = scmp.ne.s32.totalorder %s71, %s72
      %p84 = scmp.eq.s32.totalorder %s20, 3
      %p85 = por %p83, %p84
      %p87 = scmp.ne.s32.totalorder %s72, %s86
      %p88 = scmp.eq.s32.totalorder %s20, 0
      %p89 = por %p87, %p88
      %p90 = scmp.le.s32.totalorder 1, %s14
      %p91 = scmp.lt.s32.totalorder %s14, 5
      %p92 = pnand %p90, %p91
      %p93 = pneg %p92
      // Predicated region
      $region9: #{tpu_custom_call.1} parent=5 // pred_check
        _
      $region10: #{tpu_custom_call.1} parent=5 // pred_check_branch
        %95 = sbr.rel (%p92) target = $region12
      $region11: #{tpu_custom_call.1} parent=5 // pred_region
        %s96 = ssub.s32 %s14, 1
        // Predicated region
        $region13: #{tpu_custom_call.1} parent=11 // pred_check
          %p97 = pneg %p35
        $region14: #{tpu_custom_call.1} parent=11 // pred_check_branch
          %99 = sbr.rel (%p97) target = $region16
        $region15: #{tpu_custom_call.1} parent=11 // pred_region
          _
        $region16: #{tpu_custom_call.1} parent=11 // pred_fallthru
          _
      $region12: #{tpu_custom_call.1} parent=5 // pred_fallthru
        _
      %p100 = scmp.lt.s32.totalorder %s14, 4
      // Predicated region
      $region17: #{tpu_custom_call.1} parent=5 // pred_check
        %p101 = pneg %p100
      $region18: #{tpu_custom_call.1} parent=5 // pred_check_branch
        %103 = sbr.rel (%p101) target = $region20
      $region19: #{tpu_custom_call.1} parent=5 // pred_region
        // Predicated region
        $region21: #{tpu_custom_call.1} parent=19 // pred_check
          %p104 = pneg %p55
        $region22: #{tpu_custom_call.1} parent=19 // pred_check_branch
          %106 = sbr.rel (%p104) target = $region24
        $region23: #{tpu_custom_call.1} parent=19 // pred_region
          %s107 = sand.u32 %s45, 1
          %s108 = scalar_lea.sflag [#allocation7], %s107
          %s109 = sand.u32 %s45, 1
          %s110 = smul.addr %s109, 8
          %s111 = scalar_lea.vmem [#allocation6], %s110
          %113 = vsyncadd %s108, 0
          %s114 = smul.addr %s14, 8
          %s115 = scalar_lea.hbm %s1, %s114
          %s117 = sshll.u32 %s115, 4
          %s118 = int_to_ptr.hbm [resolvable:$true] %s117
          %s119 = sshll.u32 %s111, 4
          %s120 = int_to_ptr.vmem [resolvable:$true] %s119
          %122 = dma.hbm_to_vmem [thread:$0]  %s118, 128, %s120, %s108
        $region24: #{tpu_custom_call.1} parent=19 // pred_fallthru
          _
      $region20: #{tpu_custom_call.1} parent=5 // pred_fallthru
        _
      %p123 = scmp.le.s32.totalorder 1, %s14
      %p124 = scmp.lt.s32.totalorder %s14, 5
      %p125 = pnand %p123, %p124
      %p126 = pneg %p125
      // Predicated region
      $region25: #{tpu_custom_call.1} parent=5 // pred_check
        _
      $region26: #{tpu_custom_call.1} parent=5 // pred_check_branch
        %128 = sbr.rel (%p125) target = $region28
      $region27: #{tpu_custom_call.1} parent=5 // pred_region
        %s129 = ssub.s32 %s14, 1
        %s130 = sand.u32 %s48, 1
        %s131 = scalar_lea.sflag [#allocation7], %s130
        %s132 = sand.u32 %s48, 1
        %s133 = smul.addr %s132, 8
        %s134 = scalar_lea.vmem [#allocation6], %s133
        // Predicated region
        $region29: #{tpu_custom_call.1} parent=27 // pred_check
          %p135 = pneg %p61
        $region30: #{tpu_custom_call.1} parent=27 // pred_check_branch
          %137 = sbr.rel (%p135) target = $region32
        $region31: #{tpu_custom_call.1} parent=27 // pred_region
          %139 = dma.done %s131, 128
        $region32: #{tpu_custom_call.1} parent=27 // pred_fallthru
          _
        %p140 = pneg %p35
        %p141 = pneg %p32
        %s142 = sand.u32 %s48, 1
        %s143 = scalar_lea.sflag [#allocation7], %s142
        %s144 = sand.u32 %s48, 1
        %s145 = smul.addr %s144, 8
        %s146 = scalar_lea.vmem [#allocation6], %s145
        %p147 = pneg %p61
        %p148 = pneg %p58
        %p149 = pneg %p82
        %p150 = pneg %p79
        %s151 = sld [smem:[#allocation5]]
        %p152 = scmp.eq.s32.totalorder %s19, 0
        // Predicated region
        $region33: #{tpu_custom_call.1} parent=27 // pred_check
          %p153 = pneg %p152
        $region34: #{tpu_custom_call.1} parent=27 // pred_check_branch
          %155 = sbr.rel (%p153) target = $region36
        $region35: #{tpu_custom_call.1} parent=27 // pred_region
          $region37: #{tpu_custom_call.1} parent=35
            #allocation10 [shape = 's32[1]{0}', space=sflag, size = 0x4, scoped, tag = 'scoped memory for tpu_custom_call.1']
            // Predicated region
            $region38: #{tpu_custom_call.1} parent=37 // pred_check
              _
            $region39: #{tpu_custom_call.1} parent=37 // pred_check_branch
              %157 = sbr.rel target = $region41
            $region40: #{tpu_custom_call.1} parent=37 // pred_region
              %158 = sst [smem:[#allocation13]] [#allocation12]
              %159 = sst [smem:[#allocation14]] [#allocation11]
            $region41: #{tpu_custom_call.1} parent=37 // pred_fallthru
              _
            %161 = shalt.err (0)
            %s163 = sshll.u32 %s2, 4
            %s164 = int_to_ptr.hbm [resolvable:$true] %s163
            %s165 = sshll.u32 [#allocation2], 4
            %s166 = int_to_ptr.vmem [resolvable:$true] %s165
            %168 = dma.hbm_to_vmem [thread:$0]  %s164, 512, %s166, [#allocation10]
            %s169 = smul.u32 32, 1
            %s170 = sshll.u32 %s169, 4
            %171 = dma.done [#allocation10], %s170
            %v172 = vld [vmem:[#allocation2] sm:$0xff]
            %v173 = vld [vmem:[#allocation2 + $0x8] sm:$0xff]
            %v174 = vld [vmem:[#allocation2 + $0x10] sm:$0xff]
            %v175 = vld [vmem:[#allocation2 + $0x18] sm:$0xff]
            %v176 = vmul.f32 %v172, %v172
            %v177 = vmul.f32 %v173, %v173
            %v178 = vmul.f32 %v174, %v174
            %v179 = vmul.f32 %v175, %v175
            %180 = vadd.xlane.f32.xlu0 %v176
            %v181 = vpop.xlane.xlu0 %180
            %182 = vadd.xlane.f32.xlu0 %v177
            %v183 = vpop.xlane.xlu0 %182
            %184 = vadd.xlane.f32.xlu0 %v178
            %v185 = vpop.xlane.xlu0 %184
            %186 = vadd.xlane.f32.xlu0 %v179
            %v187 = vpop.xlane.xlu0 %186
            %v188 = vadd.f32 %v181, 1e-12
            %v189 = vadd.f32 %v183, 1e-12
            %v190 = vadd.f32 %v185, 1e-12
            %v191 = vadd.f32 %v187, 1e-12
            %v192 = vrsqrt.pop %v188
            %v193 = vmul.f32 %v192, %v188
            %v194 = vmul.f32 %v193, %v192
            %v195 = vmul.f32 0.5, %v194
            %v196 = vsub.f32 1.5, %v195
            %v197 = vmul.f32 %v192, %v196
            %vm198 = vweird.f32 %v188
            %vm199 = vweird.f32 %v192
            %vm200 = vmor %vm198, %vm199
            %v201 = vsel %vm200, %v192, %v197
            %v202 = vrsqrt.pop %v189
            %v203 = vmul.f32 %v202, %v189
            %v204 = vmul.f32 %v203, %v202
            %v205 = vmul.f32 0.5, %v204
            %v206 = vsub.f32 1.5, %v205
            %v207 = vmul.f32 %v202, %v206
            %vm208 = vweird.f32 %v189
            %vm209 = vweird.f32 %v202
            %vm210 = vmor %vm208, %vm209
            %v211 = vsel %vm210, %v202, %v207
            %v212 = vrsqrt.pop %v190
            %v213 = vmul.f32 %v212, %v190
            %v214 = vmul.f32 %v213, %v212
            %v215 = vmul.f32 0.5, %v214
            %v216 = vsub.f32 1.5, %v215
            %v217 = vmul.f32 %v212, %v216
            %vm218 = vweird.f32 %v190
            %vm219 = vweird.f32 %v212
            %vm220 = vmor %vm218, %vm219
            %v221 = vsel %vm220, %v212, %v217
            %v222 = vrsqrt.pop %v191
            %v223 = vmul.f32 %v222, %v191
            %v224 = vmul.f32 %v223, %v222
            %v225 = vmul.f32 0.5, %v224
            %v226 = vsub.f32 1.5, %v225
            %v227 = vmul.f32 %v222, %v226
            %vm228 = vweird.f32 %v191
            %vm229 = vweird.f32 %v222
            %vm230 = vmor %vm228, %vm229
            %v231 = vsel %vm230, %v222, %v227
            %v232 = vmul.f32 %v172, %v201
            %v233 = vmul.f32 %v173, %v211
            %v234 = vmul.f32 %v174, %v221
            %v235 = vmul.f32 %v175, %v231
            %236 = vst [vmem:[#allocation2] sm:$0xff] %v232
            %237 = vst [vmem:[#allocation2 + $0x8] sm:$0xff] %v233
            %238 = vst [vmem:[#allocation2 + $0x10] sm:$0xff] %v234
            %239 = vst [vmem:[#allocation2 + $0x18] sm:$0xff] %v235
          %vm240 = vcmask 253952
          %241 = vst.msk [vmem:[#allocation3] sm:$0x1] %vm240, 0.0
          %vm242 = vcmask 0
          %243 = vst.msk [vmem:[#allocation4] sm:$0x1] %vm242, 0.0
        $region36: #{tpu_custom_call.1} parent=27 // pred_fallthru
          _
        %v244 = vld [vmem:[%s134] sm:$0xff]
        %v245 = vmul.f32 %v244, %v244
        %246 = vadd.xlane.f32.xlu0 %v245
        %v247 = vpop.xlane.xlu0 %246
        %v248 = vadd.f32 %v247, 1e-12
        %v249 = vrsqrt.pop %v248
        %v250 = vmul.f32 %v249, %v248
        %v251 = vmul.f32 %v250, %v249
        %v252 = vmul.f32 0.5, %v251
        %v253 = vsub.f32 1.5, %v252
        %v254 = vmul.f32 %v249, %v253
        %vm255 = vweird.f32 %v248
        %vm256 = vweird.f32 %v249
        %vm257 = vmor %vm255, %vm256
        %v258 = vsel %vm257, %v249, %v254
        %v259 = vstv %s151
        %v260 = vmul.f32 %v259, %v258
        %v261 = vmul.f32 %v244, %v260
        %v262 = vld [vmem:[#allocation2] sm:$0xff]
        %v263 = vld [vmem:[#allocation2 + $0x8] sm:$0xff]
        %v264 = vld [vmem:[#allocation2 + $0x10] sm:$0xff]
        %v265 = vld [vmem:[#allocation2 + $0x18] sm:$0xff]
        %266 = vmatpush.xpose.msra.mxu0 0.0
        %267 = vmatpush.xpose.msra.mxu0 0.0
        %268 = vmatpush.xpose.msra.mxu0 0.0
        %269 = vmatpush.xpose.msra.mxu0 0.0
        %270 = vmatpush.xpose.msra.mxu0 0.0
        %271 = vmatpush.xpose.msra.mxu0 0.0
        %272 = vmatpush.xpose.msra.mxu0 0.0
        %273 = vmatpush.xpose.msra.mxu0 0.0
        %274 = vmatpush.xpose.msra.mxu0 0.0
        %275 = vmatpush.xpose.msra.mxu0 0.0
        %276 = vmatpush.xpose.msra.mxu0 0.0
        %277 = vmatpush.xpose.msra.mxu0 0.0
        %278 = vmatpush.xpose.msra.mxu0 %v265
        %279 = vmatpush.xpose.msra.mxu0 %v264
        %280 = vmatpush.xpose.msra.mxu0 %v263
        %281 = vmatpush.xpose.msra.mxu0 %v262
        %282 = vmatmul.f32.gmra.mxu0 %v261
        %v283 = vpop.f32.mrf.mxu0
        %v284 = vadd.f32 0.0, %v283
        %285 = vdwg.mxu0
        %s286 = smul.u32 %s19, 8
        %s287 = scalar_lea.vmem [#allocation2], %s286
        %v288 = vld [vmem:[%s287] sm:$0xff]
        %v289 = vmul.f32 %v261, %v288
        %290 = vadd.xlane.f32.xlu0 %v289
        %v291 = vpop.xlane.xlu0 %290
        %v292 = vsub.f32 %v284, %v259
        %v293 = vmul.f32 %v292, 1.442695
        %v294 = vpow.pop %v293
        %vm295 = vcmask 261120
        %v296 = vsel %vm295, %v294, 0.0
        %297 = vadd.xlane.f32.xlu0 %v296
        %v298 = vpop.xlane.xlu0 %297
        %v299 = vlog2.pop %v298
        %v300 = vmul.f32 %v299, 0.6931472
        %v301 = vadd.f32 %v300, %v259
        %v302 = vld [vmem:[#allocation4] sm:$0x1]
        %v303 = vrot.slane %v301, 4
        %v304 = vadd.f32 %v301, %v303
        %v305 = vrot.slane %v304, 2
        %v306 = vadd.f32 %v304, %v305
        %v307 = vrot.slane %v306, 1
        %v308 = vadd.f32 %v306, %v307
        %v309 = vrot.slane %v291, 4
        %v310 = vadd.f32 %v291, %v309
        %v311 = vrot.slane %v310, 2
        %v312 = vadd.f32 %v310, %v311
        %v313 = vrot.slane %v312, 1
        %v314 = vadd.f32 %v312, %v313
        %v315 = vmul.f32 %v314, 2.0
        %v316 = vsub.f32 %v308, %v315
        %v317 = vadd.f32 %v302, %v316
        %vm318 = vcmask 0
        %319 = vst.msk [vmem:[#allocation4] sm:$0x1] %vm318, %v317
        %v320 = vld [vmem:[#allocation3] sm:$0x1]
        %v321 = vrot.slane %v296, 4
        %v322 = vadd.f32 %v296, %v321
        %v323 = vrot.slane %v322, 2
        %v324 = vadd.f32 %v322, %v323
        %v325 = vrot.slane %v324, 1
        %v326 = vadd.f32 %v324, %v325
        %v327 = vadd.f32 %v320, %v326
        %vm328 = vcmask 253952
        %329 = vst.msk [vmem:[#allocation3] sm:$0x1] %vm328, %v327
        %p330 = scmp.eq.s32.totalorder %s19, 3
        // Predicated region
        $region42: #{tpu_custom_call.1} parent=27 // pred_check
          %p331 = pneg %p330
        $region43: #{tpu_custom_call.1} parent=27 // pred_check_branch
          %333 = sbr.rel (%p331) target = $region45
        $region44: #{tpu_custom_call.1} parent=27 // pred_region
          %v334 = vld [vmem:[#allocation3] sm:$0x1]
          %v335 = vlog2.pop %v334
          %v336 = vmul.f32 %v335, 0.6931472
          %v337 = vsel %vm328, %v336, 0.0
          %338 = vadd.xlane.f32.xlu0 %v337
          %v339 = vpop.xlane.xlu0 %338
          %s340 = smul.f32 %s151, 32.0
          %v341 = vstv %s340
          %v342 = vadd.f32 %v339, %v341
          %v343 = vld [vmem:[#allocation4] sm:$0x1]
          %v344 = vadd.f32 %v343, %v342
          %v345 = vmul.f32 %v344, 0.5
          %v346 = vrcp.pop 32.0
          %v347 = vmul.f32 32.0, %v346
          %v348 = vsub.f32 1.0, %v347
          %v349 = vmul.f32 %v346, %v348
          %v350 = vadd.f32 %v346, %v349
          %vm351 = vweird.f32 %v346
          %v352 = vsel %vm351, %v346, %v350
          %v353 = vmul.f32 %v345, %v352
          %354 = vst.msk [vmem:[#allocation9] sm:$0x1] %vm318, %v353
        $region45: #{tpu_custom_call.1} parent=27 // pred_fallthru
          _
        // Predicated region
        $region46: #{tpu_custom_call.1} parent=27 // pred_check
          %p355 = pneg %p79
        $region47: #{tpu_custom_call.1} parent=27 // pred_check_branch
          %357 = sbr.rel (%p355) target = $region49
        $region48: #{tpu_custom_call.1} parent=27 // pred_region
          %359 = vsyncadd [#allocation8], 0
          %s361 = sshll.u32 [#allocation9], 4
          %s362 = int_to_ptr.vmem [resolvable:$true] %s361
          %s363 = sshll.u32 %s3, 4
          %s364 = int_to_ptr.hbm [resolvable:$true] %s363
          %366 = dma.vmem_to_hbm [thread:$0]  %s362, 16, %s364, [#allocation8]
        $region49: #{tpu_custom_call.1} parent=27 // pred_fallthru
          _
        // Predicated region
        $region50: #{tpu_custom_call.1} parent=27 // pred_check
          %p367 = pneg %p79
        $region51: #{tpu_custom_call.1} parent=27 // pred_check_branch
          %369 = sbr.rel (%p367) target = $region53
        $region52: #{tpu_custom_call.1} parent=27 // pred_region
          %371 = dma.done [#allocation8], 16
        $region53: #{tpu_custom_call.1} parent=27 // pred_fallthru
          _
      $region28: #{tpu_custom_call.1} parent=5 // pred_fallthru
        _
      %p372 = scmp.le.s32.totalorder 2, %s14
      // Predicated region
      $region54: #{tpu_custom_call.1} parent=5 // pred_check
        %p373 = pneg %p372
      $region55: #{tpu_custom_call.1} parent=5 // pred_check_branch
        %375 = sbr.rel (%p373) target = $region57
      $region56: #{tpu_custom_call.1} parent=5 // pred_region
        %s376 = ssub.s32 %s14, 2
      $region57: #{tpu_custom_call.1} parent=5 // pred_fallthru
        _
    $region6: #{tpu_custom_call.1} parent=1 // loop_footer
      %s18 = sadd.s32 1, %s14
    $region7: #{tpu_custom_call.1} parent=1 // loop_footer_branch
      %13 = sbr.rel target = $region3
    $region8: #{tpu_custom_call.1} parent=1 // loop_exit
      _
    %377 = vsyncpa [#allocation7], 1
    %s378 = scalar_lea.sflag [#allocation7], 1
    %379 = vsyncpa %s378, 1
    %380 = vsyncpa [#allocation8], 1
    %s381 = scalar_lea.sflag [#allocation8], 1
    %382 = vsyncpa %s381, 1

</llo_original>
